<compile_context>
chip_gen: v5e
topology: v5e:2x2
jax: 0.10.0
libtpu: 0.0.40
codegen_flags: <defaults>
</compile_context>

<pallas_src>
import functools

import jax
import jax.numpy as jnp
from jax import lax
from jax.experimental import pallas as pl
from jax.experimental.pallas import tpu as pltpu


# ----------------------------- Pallas kernel ------------------------------- #

_STATIC_UNROLL_B = 8  # beyond this, use fori_loop to bound vreg live ranges


def _cutmix_pair_kernel(mask_ref, x_ref, o_ref):
    """One grid step: whole batch x one (ct_tile, hw_tile) slab.

    mask_ref : VMEM (1, hw_tile) int32   -- 1 inside the CutMix box, 0 outside
    x_ref    : VMEM (B, ct_tile, hw_tile)
    o_ref    : VMEM (B, ct_tile, hw_tile)

    out[b] = where(in_box, x[B-1-b], x[b]); the batch flip is done in VMEM, so
    every sample is DMA'd from HBM exactly once and written exactly once.
    """
    B = x_ref.shape[0]
    # Keep the mask at (1, hw_tile): compare once, let jnp.where broadcast along
    # sublanes (stride-0 read) instead of materializing a (ct_tile, hw_tile) temp.
    in_box = mask_ref[...] != 0

    def paste(b):
        return jnp.where(in_box, x_ref[B - 1 - b], x_ref[b]).astype(o_ref.dtype)

    if B <= _STATIC_UNROLL_B:
        for b in range(B):                      # small batch: static unroll
            o_ref[b] = paste(b)
    else:
        def body(b, carry):                     # large batch: bounded live ranges
            o_ref[b] = paste(b)
            return carry
        lax.fori_loop(0, B, body, None, unroll=2)


# ------------------------------ tiling helpers ----------------------------- #

def _vmem_budget():
    """Per-generation (target block bytes, vmem_limit_bytes).

    2 arrays (in + out) x 2 pipeline buffers x block + the tiny mask must fit the
    scoped-VMEM limit, well under physical VMEM (v5e/v6e: 128 MiB, v7x: 64 MiB/TC).
    """
    cap = 128 * 1024 * 1024
    try:
        cap = getattr(pltpu.get_tpu_info(), "vmem_capacity_bytes", cap) or cap
    except Exception:  # interpret mode / non-TPU backend: keep conservative default
        cap = 64 * 1024 * 1024
    if cap <= 96 * 1024 * 1024:                    # v7x-class: 64 MiB per TensorCore
        return 4 * 1024 * 1024, 32 * 1024 * 1024   # 4 x 4 MiB buffers + slack
    return 6 * 1024 * 1024, 48 * 1024 * 1024       # v5e/v6e: raise the 16/32 MiB default


def _pick_tile(dim, gran, max_elems):
    """Full dim if it fits (always layout-legal); otherwise the largest multiple
    of `gran` <= max_elems (ragged last block handled by pl.cdiv + masked writeback)."""
    if dim <= max_elems:
        return dim
    return max(gran, (max_elems // gran) * gran)


def _pick_block(B, CT, HW, dtype, target_bytes):
    itemsize = jnp.dtype(dtype).itemsize
    # dtype-aware sublane granularity: 8 rows f32, 16 bf16/f16, 32 int8/uint8/fp8
    sub_gran = max(8, 32 // max(1, itemsize))
    min_ct = min(CT, sub_gran)
    max_hw = max(128, target_bytes // max(1, B * min_ct * itemsize))
    hw_tile = _pick_tile(HW, 128, max_hw)          # keep lanes as dense as possible
    max_ct = max(min_ct, target_bytes // max(1, B * hw_tile * itemsize))
    ct_tile = _pick_tile(CT, sub_gran, max_ct)
    return ct_tile, hw_tile


# ------------------------------ pallas wrapper ----------------------------- #

def cutmix_apply(x_flat, box_mask, *, donate=False):
    """x_flat: (B, CT, HW); box_mask: (1, HW) int32 (1 inside the cut box).

    donate=True aliases the output onto the x_flat HBM buffer (only a win when the
    caller actually donates x to jit; otherwise XLA inserts a defensive copy).
    """
    B, CT, HW = x_flat.shape
    target_bytes, vmem_limit = _vmem_budget()
    ct_tile, hw_tile = _pick_block(B, CT, HW, x_flat.dtype, target_bytes)

    # hw tiles outermost (largest extent -> >= 2 parallel steps for v7x's 2 TCs);
    # ct innermost so the mask block index is constant along the fastest-varying
    # axis and is re-used (no re-DMA) across the inner steps.
    grid = (pl.cdiv(HW, hw_tile), pl.cdiv(CT, ct_tile))
    x_blk = pl.BlockSpec((B, ct_tile, hw_tile), lambda i, j: (0, j, i))
    mask_blk = pl.BlockSpec((1, hw_tile), lambda i, j: (0, i))

    # TODO(synk): biggest remaining lever -- prefetch (yl, yh) scalars and skip the
    # DMA of row-tiles that lie entirely outside the cut box (memory_space=pl.ANY +
    # manual pltpu.make_async_copy under pl.when, paired with the aliasing below);
    # cuts ~1/3 of HBM traffic on average for alpha=1.
    return pl.pallas_call(
        _cutmix_pair_kernel,
        out_shape=jax.ShapeDtypeStruct(x_flat.shape, x_flat.dtype),
        grid=grid,
        in_specs=[mask_blk, x_blk],
        out_specs=x_blk,
        input_output_aliases={1: 0} if donate else {},
        compiler_params=pltpu.CompilerParams(
            dimension_semantics=("parallel", "parallel"),
            vmem_limit_bytes=vmem_limit),
    )(box_mask, x_flat)


# --------------------------- plain-JAX glue (traced) ------------------------ #

def convert_to_one_hot(labels, num_classes, label_smoothing=0.0):
    off = label_smoothing / num_classes
    on = 1.0 - label_smoothing + off
    oh = jax.nn.one_hot(labels, num_classes, dtype=jnp.float32)
    return oh * (on - off) + off


def _rand_box(key, H, W, lam):
    """Traced equivalent of CutMix._get_rand_box (no host syncs)."""
    ratio = jnp.sqrt(1.0 - lam)
    cut_h = (H * ratio).astype(jnp.int32)
    cut_w = (W * ratio).astype(jnp.int32)
    ky, kx = jax.random.split(key)
    cy = jax.random.randint(ky, (), 0, H, dtype=jnp.int32)
    cx = jax.random.randint(kx, (), 0, W, dtype=jnp.int32)
    yl = jnp.clip(cy - cut_h // 2, 0, H)
    yh = jnp.clip(cy + cut_h // 2, 0, H)
    xl = jnp.clip(cx - cut_w // 2, 0, W)
    xh = jnp.clip(cx + cut_w // 2, 0, W)
    return yl, yh, xl, xh


def _box_mask(H, W, yl, yh, xl, xh):
    """Flattened (1, H*W) int32 mask; computed in XLA so the kernel needs no
    per-element integer div/mod."""
    hw = jnp.arange(H * W, dtype=jnp.int32)
    h = hw // W
    w = hw % W
    m = (h >= yl) & (h < yh) & (w >= xl) & (w < xh)
    return m.astype(jnp.int32).reshape(1, H * W)


def cutmix_forward(x_video, labels, key, *, alpha=1.0, label_smoothing=0.0,
                   num_classes=400, one_hot=False, x_audio=None,
                   donate_video=False):
    """Mirrors CutMix.forward.  All randomness is device-side (jax.random);
    the hot elementwise paste runs in the Pallas kernel."""
    assert x_video.ndim in (4, 5), "Please correct input shape."
    assert x_video.shape[0] > 1, "Cutmix cannot be applied to a single instance."
    B = x_video.shape[0]
    H, W = x_video.shape[-2], x_video.shape[-1]

    k_beta, k_box_v, k_box_a = jax.random.split(key, 3)
    lam = jax.random.beta(k_beta, alpha, alpha)

    yl, yh, xl, xh = _rand_box(k_box_v, H, W, lam)
    box_area = ((yh - yl) * (xh - xl)).astype(jnp.float32)
    lam_corrected = 1.0 - box_area / float(H * W)

    x_flat = x_video.reshape(B, -1, H * W)              # free, row-major reshape
    mask = _box_mask(H, W, yl, yh, xl, xh)
    mixed_video = cutmix_apply(x_flat, mask, donate=donate_video).reshape(x_video.shape)

    if one_hot:
        labels1 = labels.astype(jnp.float32)
        labels2 = labels1[::-1]
    else:
        labels1 = convert_to_one_hot(labels, num_classes, label_smoothing)
        labels2 = convert_to_one_hot(labels[::-1], num_classes, label_smoothing)
    new_labels = labels1 * lam_corrected + labels2 * (1.0 - lam_corrected)

    if x_audio is not None:
        assert x_audio.ndim in (4, 5) and x_audio.shape[0] > 1
        Ha, Wa = x_audio.shape[-2], x_audio.shape[-1]
        yla, yha, xla, xha = _rand_box(k_box_a, Ha, Wa, lam)
        mask_a = _box_mask(Ha, Wa, yla, yha, xla, xha)
        a_flat = x_audio.reshape(x_audio.shape[0], -1, Ha * Wa)
        mixed_audio = cutmix_apply(a_flat, mask_a).reshape(x_audio.shape)
        return mixed_video, mixed_audio, new_labels

    return mixed_video, new_labels


# --------------------------------- main ------------------------------------ #

if __name__ == "__main__":
    key = jax.random.PRNGKey(0)
    B, C, T, H, W = 2, 4, 8, 16, 16
    num_classes = 32

    kx, kl, kmix = jax.random.split(key, 3)
    x_video = jax.random.normal(kx, (B, C, T, H, W), dtype=jnp.float32)
    labels = jax.random.randint(kl, (B,), 0, num_classes)

    fwd = jax.jit(
        functools.partial(
            cutmix_forward,
            alpha=1.0,
            label_smoothing=0.1,
            num_classes=num_classes,
            one_hot=False,
            donate_video=True,      # pallas output aliases the donated x buffer
        ),
        donate_argnums=(0,),
    )

    out_video, out_labels = fwd(x_video, labels, kmix)
    jax.block_until_ready((out_video, out_labels))

    assert out_video.shape == (B, C, T, H, W)
    assert out_labels.shape == (B, num_classes)
    print("KERNEL_OK")
</pallas_src>

<mosaic_0001>
module attributes {stable_mosaic.version = 11 : i64} {
  func.func @_cutmix_pair_kernel(%arg0: i32, %arg1: i32, %arg2: memref<1x256xi32, #tpu.memory_space<vmem>>, %arg3: memref<2x32x256xf32, #tpu.memory_space<vmem>>, %arg4: memref<2x32x256xf32, #tpu.memory_space<vmem>>) attributes {dimension_semantics = [#tpu.dimension_semantics<parallel>, #tpu.dimension_semantics<parallel>], iteration_bounds = array<i64: 1, 1>, scalar_prefetch = 0 : i64, scratch_operands = 0 : i64, tpu.core_type = #tpu.core_type<tc>, window_params = [{transform_indices = @transform_0, window_bounds = array<i64: 1, 256>}, {transform_indices = @transform_1, window_bounds = array<i64: 2, 32, 256>}, {transform_indices = @transform_2, window_bounds = array<i64: 2, 32, 256>}]} {
    %c0 = arith.constant 0 : index
    %c0_0 = arith.constant 0 : index
    %0 = vector.load %arg2[%c0, %c0_0] : memref<1x256xi32, #tpu.memory_space<vmem>>, vector<1x256xi32>
    %c0_i32 = arith.constant 0 : i32
    %1 = vector.broadcast %c0_i32 : i32 to vector<1x256xi32>
    %2 = arith.cmpi ne, %0, %1 : vector<1x256xi32>
    %c1 = arith.constant 1 : index
    %c0_1 = arith.constant 0 : index
    %c0_2 = arith.constant 0 : index
    %3 = vector.load %arg3[%c1, %c0_1, %c0_2] : memref<2x32x256xf32, #tpu.memory_space<vmem>>, vector<1x32x256xf32>
    %4 = vector.shape_cast %3 : vector<1x32x256xf32> to vector<32x256xf32>
    %c0_3 = arith.constant 0 : index
    %c0_4 = arith.constant 0 : index
    %c0_5 = arith.constant 0 : index
    %5 = vector.load %arg3[%c0_3, %c0_4, %c0_5] : memref<2x32x256xf32, #tpu.memory_space<vmem>>, vector<1x32x256xf32>
    %6 = vector.shape_cast %5 : vector<1x32x256xf32> to vector<32x256xf32>
    %7 = vector.shape_cast %2 : vector<1x256xi1> to vector<1x256xi1>
    %8 = vector.broadcast %7 : vector<1x256xi1> to vector<32x256xi1>
    %9 = arith.select %8, %4, %6 : vector<32x256xi1>, vector<32x256xf32>
    %c0_6 = arith.constant 0 : index
    %c0_7 = arith.constant 0 : index
    %c0_8 = arith.constant 0 : index
    %10 = vector.load %arg4[%c0_6, %c0_7, %c0_8] : memref<2x32x256xf32, #tpu.memory_space<vmem>>, vector<1x32x256xf32>
    %11 = vector.shape_cast %10 : vector<1x32x256xf32> to vector<32x256xf32>
    %12 = vector.shape_cast %9 : vector<32x256xf32> to vector<1x32x256xf32>
    tpu.vector_store %arg4[%c0_6, %c0_7, %c0_8], %12 {strides = array<i32>} : memref<2x32x256xf32, #tpu.memory_space<vmem>>, vector<1x32x256xf32>,
    %c0_9 = arith.constant 0 : index
    %c0_10 = arith.constant 0 : index
    %c0_11 = arith.constant 0 : index
    %13 = vector.load %arg3[%c0_9, %c0_10, %c0_11] : memref<2x32x256xf32, #tpu.memory_space<vmem>>, vector<1x32x256xf32>
    %14 = vector.shape_cast %13 : vector<1x32x256xf32> to vector<32x256xf32>
    %c1_12 = arith.constant 1 : index
    %c0_13 = arith.constant 0 : index
    %c0_14 = arith.constant 0 : index
    %15 = vector.load %arg3[%c1_12, %c0_13, %c0_14] : memref<2x32x256xf32, #tpu.memory_space<vmem>>, vector<1x32x256xf32>
    %16 = vector.shape_cast %15 : vector<1x32x256xf32> to vector<32x256xf32>
    %17 = vector.shape_cast %2 : vector<1x256xi1> to vector<1x256xi1>
    %18 = vector.broadcast %17 : vector<1x256xi1> to vector<32x256xi1>
    %19 = arith.select %18, %14, %16 : vector<32x256xi1>, vector<32x256xf32>
    %c1_15 = arith.constant 1 : index
    %c0_16 = arith.constant 0 : index
    %c0_17 = arith.constant 0 : index
    %20 = vector.load %arg4[%c1_15, %c0_16, %c0_17] : memref<2x32x256xf32, #tpu.memory_space<vmem>>, vector<1x32x256xf32>
    %21 = vector.shape_cast %20 : vector<1x32x256xf32> to vector<32x256xf32>
    %22 = vector.shape_cast %19 : vector<32x256xf32> to vector<1x32x256xf32>
    tpu.vector_store %arg4[%c1_15, %c0_16, %c0_17], %22 {strides = array<i32>} : memref<2x32x256xf32, #tpu.memory_space<vmem>>, vector<1x32x256xf32>,
    return
  }
  func.func @transform_0(%arg0: i32, %arg1: i32) -> (i32, i32) {
    %c0_i32 = arith.constant 0 : i32
    %c0_i32_0 = arith.constant 0 : i32
    return %c0_i32, %arg0 : i32, i32
  }
  func.func @transform_1(%arg0: i32, %arg1: i32) -> (i32, i32, i32) {
    %c0_i32 = arith.constant 0 : i32
    %c0_i32_0 = arith.constant 0 : i32
    return %c0_i32, %arg1, %arg0 : i32, i32, i32
  }
  func.func @transform_2(%arg0: i32, %arg1: i32) -> (i32, i32, i32) {
    %c0_i32 = arith.constant 0 : i32
    %c0_i32_0 = arith.constant 0 : i32
    return %c0_i32, %arg1, %arg0 : i32, i32, i32
  }
}

</mosaic_0001>

<llo_original>
// kernel: cutmix_forward.5
$region0: #{cutmix_forward.5}
  #allocation0 [shape = 'u32[]', space=smem, size = 0x4, offset = 0x4, fixed_abs, tag = 'smem constant byte address 0x4 - core index']
  #allocation1 [shape = 'u32[72,128]{1,0:T(1,128)}', space=vmem, size = 0x9000, scoped, tag = 'internal scratch']
  %s0 = inlined_call_operand.vmem [shape: s32[1,256], index: 0, kind: input, shape index: {}]
  %s1 = inlined_call_operand.vmem [shape: f32[2,32,256], index: 1, kind: input, shape index: {}, may-alias: {1,2}]
  %s2 = inlined_call_operand.vmem [shape: f32[2,32,256], index: 2, kind: output, shape index: {}, may-alias: {1,2}]
  %s3 = sld [smem:[#allocation0]]
  $region18: #{cutmix_forward.5} parent=0
    _
  %s5 = ssub.s32 1, %s3
  %s6 = scalar_select 0, %s5, %s3
  // Predicated region
  $region2: #{cutmix_forward.5} parent=0 // pred_check
    _
  $region3: #{cutmix_forward.5} parent=0 // pred_check_branch
    %8 = sbr.rel (0) target = $region5
  $region4: #{cutmix_forward.5} parent=0 // pred_region
    _
  $region5: #{cutmix_forward.5} parent=0 // pred_fallthru
    _
  // Predicated region
  $region6: #{cutmix_forward.5} parent=0 // pred_check
    _
  $region7: #{cutmix_forward.5} parent=0 // pred_check_branch
    %10 = sbr.rel (0) target = $region9
  $region8: #{cutmix_forward.5} parent=0 // pred_region
    _
  $region9: #{cutmix_forward.5} parent=0 // pred_fallthru
    _
  %v11 = vld [vmem:[%s0] sm:$0x3]
  %vm12 = vcmp.ne.s32.totalorder %v11, 0
  %s13 = scalar_lea.vmem %s1, 64
  %v14 = vld [vmem:[%s13] sm:$0xff]
  %v15 = vld [vmem:[%s13 + $0x8] sm:$0xff]
  %v16 = vld [vmem:[%s13 + $0x10] sm:$0xff]
  %v17 = vld [vmem:[%s13 + $0x18] sm:$0xff]
  %v18 = vld [vmem:[%s13 + $0x20] sm:$0xff]
  %v19 = vld [vmem:[%s13 + $0x28] sm:$0xff]
  %v20 = vld [vmem:[%s13 + $0x30] sm:$0xff]
  %v21 = vld [vmem:[%s13 + $0x38] sm:$0xff]
  %v22 = vld [vmem:[%s1] sm:$0xff]
  %v23 = vld [vmem:[%s1 + $0x8] sm:$0xff]
  %v24 = vld [vmem:[%s1 + $0x10] sm:$0xff]
  %v25 = vld [vmem:[%s1 + $0x18] sm:$0xff]
  %v26 = vld [vmem:[%s1 + $0x20] sm:$0xff]
  %v27 = vld [vmem:[%s1 + $0x28] sm:$0xff]
  %v28 = vld [vmem:[%s1 + $0x30] sm:$0xff]
  %v29 = vld [vmem:[%s1 + $0x38] sm:$0xff]
  %v30 = vsel %vm12, 1, 0
  %v31 = vperm.slane %v30, 0
  %v32 = vperm.slane %v30, 1
  %vm33 = vcmp.eq.s32.totalorder %v31, 1
  %vm34 = vcmp.eq.s32.totalorder %v32, 1
  %v35 = vsel %vm33, %v14, %v22
  %v36 = vsel %vm34, %v15, %v23
  %v37 = vsel %vm33, %v16, %v24
  %v38 = vsel %vm34, %v17, %v25
  %v39 = vsel %vm33, %v18, %v26
  %v40 = vsel %vm34, %v19, %v27
  %v41 = vsel %vm33, %v20, %v28
  %v42 = vsel %vm34, %v21, %v29
  %43 = vst [vmem:[%s2] sm:$0xff] %v35
  %44 = vst [vmem:[%s2 + $0x8] sm:$0xff] %v36
  %45 = vst [vmem:[%s2 + $0x10] sm:$0xff] %v37
  %46 = vst [vmem:[%s2 + $0x18] sm:$0xff] %v38
  %47 = vst [vmem:[%s2 + $0x20] sm:$0xff] %v39
  %48 = vst [vmem:[%s2 + $0x28] sm:$0xff] %v40
  %49 = vst [vmem:[%s2 + $0x30] sm:$0xff] %v41
  %50 = vst [vmem:[%s2 + $0x38] sm:$0xff] %v42
  %v51 = vld [vmem:[%s1] sm:$0xff]
  %v52 = vld [vmem:[%s1 + $0x8] sm:$0xff]
  %v53 = vld [vmem:[%s1 + $0x10] sm:$0xff]
  %v54 = vld [vmem:[%s1 + $0x18] sm:$0xff]
  %v55 = vld [vmem:[%s1 + $0x20] sm:$0xff]
  %v56 = vld [vmem:[%s1 + $0x28] sm:$0xff]
  %v57 = vld [vmem:[%s1 + $0x30] sm:$0xff]
  %v58 = vld [vmem:[%s1 + $0x38] sm:$0xff]
  %v59 = vld [vmem:[%s13] sm:$0xff]
  %v60 = vld [vmem:[%s13 + $0x8] sm:$0xff]
  %v61 = vld [vmem:[%s13 + $0x10] sm:$0xff]
  %v62 = vld [vmem:[%s13 + $0x18] sm:$0xff]
  %v63 = vld [vmem:[%s13 + $0x20] sm:$0xff]
  %v64 = vld [vmem:[%s13 + $0x28] sm:$0xff]
  %v65 = vld [vmem:[%s13 + $0x30] sm:$0xff]
  %v66 = vld [vmem:[%s13 + $0x38] sm:$0xff]
  %v67 = vsel %vm33, %v51, %v59
  %v68 = vsel %vm34, %v52, %v60
  %v69 = vsel %vm33, %v53, %v61
  %v70 = vsel %vm34, %v54, %v62
  %v71 = vsel %vm33, %v55, %v63
  %v72 = vsel %vm34, %v56, %v64
  %v73 = vsel %vm33, %v57, %v65
  %v74 = vsel %vm34, %v58, %v66
  %s75 = scalar_lea.vmem %s2, 64
  %76 = vst [vmem:[%s75] sm:$0xff] %v67
  %77 = vst [vmem:[%s75 + $0x8] sm:$0xff] %v68
  %78 = vst [vmem:[%s75 + $0x10] sm:$0xff] %v69
  %79 = vst [vmem:[%s75 + $0x18] sm:$0xff] %v70
  %80 = vst [vmem:[%s75 + $0x20] sm:$0xff] %v71
  %81 = vst [vmem:[%s75 + $0x28] sm:$0xff] %v72
  %82 = vst [vmem:[%s75 + $0x30] sm:$0xff] %v73
  %83 = vst [vmem:[%s75 + $0x38] sm:$0xff] %v74
  // Predicated region
  $region10: #{cutmix_forward.5} parent=0 // pred_check
    _
  $region11: #{cutmix_forward.5} parent=0 // pred_check_branch
    %85 = sbr.rel (0) target = $region13
  $region12: #{cutmix_forward.5} parent=0 // pred_region
    _
  $region13: #{cutmix_forward.5} parent=0 // pred_fallthru
    _
  // Predicated region
  $region14: #{cutmix_forward.5} parent=0 // pred_check
    _
  $region15: #{cutmix_forward.5} parent=0 // pred_check_branch
    %87 = sbr.rel (0) target = $region17
  $region16: #{cutmix_forward.5} parent=0 // pred_region
    _
  $region17: #{cutmix_forward.5} parent=0 // pred_fallthru
    _

</llo_original>
